<compile_context>
chip_gen: v5e
topology: v5e:2x2
jax: 0.10.0
libtpu: 0.0.40
codegen_flags: <defaults>
</compile_context>

<pallas_src>
import functools

import jax
import jax.numpy as jnp
from jax.experimental import pallas as pl
from jax.experimental.pallas import tpu as pltpu


_OUT_W = 128          # single lane-dense output slab holding both heads
_MAX_TILE_ROWS = 512  # per-step batch tile cap (keeps VMEM tiny on v7x)


def _round_up(x, m):
    return (x + m - 1) // m * m


def _actor_kernel(action_amp, position_amp, bound_lo, ln_eps, actions,
                  state_ref, w1t_ref, lnp_ref, w2t_ref, b2_ref, out_ref):
    # ---- lin1: x @ w1.T + b1 (MXU, f32 accumulation) -------------------------
    x = state_ref[...].astype(w1t_ref.dtype)                     # cast in-kernel
    h = jnp.dot(x, w1t_ref[...], preferred_element_type=jnp.float32)

    lnp = lnp_ref[...]                                            # (3, H) f32
    h = h + lnp[0:1, :]                                           # + b1

    # ---- LayerNorm over the hidden dim (f32) ---------------------------------
    mu = jnp.mean(h, axis=-1, keepdims=True)
    xc = h - mu
    var = jnp.mean(xc * xc, axis=-1, keepdims=True)
    hn = xc * jax.lax.rsqrt(var + ln_eps)
    hn = hn * lnp[1:2, :] + lnp[2:3, :]

    # ---- sigmoid nonlinearity (self.hidden in the torch module) --------------
    hid = jax.nn.sigmoid(hn)                                      # (TB, H) f32

    # ---- lin2: both heads in one 128-lane slab --------------------------------
    hid = hid.astype(w2t_ref.dtype)
    y = jnp.dot(hid, w2t_ref[...], preferred_element_type=jnp.float32)
    y = y + b2_ref[...]                                           # (TB, 128)

    # Lanes [0, actions) -> action head (tanh * amp); lanes [actions, ...) ->
    # position head.  Single tanh per lane using sigmoid(x) = 0.5*tanh(x/2)+0.5;
    # the blend is pure-VPU selects (no slicing, no relayout, unmasked vst).
    lane = jax.lax.broadcasted_iota(jnp.int32, y.shape, 1)
    is_act = lane < actions
    t = jnp.tanh(jnp.where(is_act, y, 0.5 * y))
    out_ref[...] = jnp.where(is_act,
                             t * action_amp,
                             (0.5 * t + 0.5) * position_amp + bound_lo)


def prepare_actor_params(params, *, actions, bounds, action_amp=1.0,
                         ln_eps=1e-5, matmul_dtype=jnp.float32):
    """One-time parameter prep (transpose / pad / coalesce / cast).

    Do this once outside the hot loop; actor_forward then only touches the
    pre-laid-out arrays.
    """
    w1, b1, ln_g, ln_b, w2, b2 = (params["w1"], params["b1"], params["ln_g"],
                                  params["ln_b"], params["w2"], params["b2"])
    hidden, inp_size = w1.shape
    assert w2.shape == (2 * actions, hidden)
    assert 2 * actions <= _OUT_W, "both heads must fit in one 128-lane slab"

    lane_pad = _OUT_W - 2 * actions

    # lin1 weight, pre-transposed (optionally bf16 for the MXU).
    w1t = w1.T.astype(matmul_dtype)                               # (D, H)

    # lin2: single merged slab.  Cols [0, A) = action head, [A, 2A) = position
    # head, remaining lanes zero (their outputs are sliced off in the wrapper).
    w2t = jnp.pad(w2.T, ((0, 0), (0, lane_pad))).astype(matmul_dtype)   # (H, 128)
    b2r = jnp.pad(b2, (0, lane_pad)).reshape(1, _OUT_W).astype(jnp.float32)

    # Coalesce the three (hidden,) vectors into a single (3, hidden) input.
    lnp = jnp.stack([b1, ln_g, ln_b]).astype(jnp.float32)         # (3, H)

    return dict(
        w1t=w1t, lnp=lnp, w2t=w2t, b2r=b2r,
        actions=int(actions), hidden=int(hidden), inp_size=int(inp_size),
        action_amp=float(action_amp),
        position_amp=float(bounds[1] - bounds[0]),
        bound_lo=float(bounds[0]),
        ln_eps=float(ln_eps),
    )


def _choose_batch_tile(B):
    """Batch tile: multiple of 8, even tile count >= 2 for v7x's two cores,
    tiles capped at _MAX_TILE_ROWS to amortize per-step pipeline overhead."""
    b8 = _round_up(max(B, 1), 8)
    if b8 <= 8:
        return b8                       # tiny batch: one tile
    n_tiles = 2 * max(1, pl.cdiv(b8, 2 * _MAX_TILE_ROWS))
    return _round_up(pl.cdiv(B, n_tiles), 8)


def actor_forward(state, prep):
    """Runs the Actor forward pass with a batch-gridded Pallas kernel."""
    actions = prep["actions"]
    hidden = prep["hidden"]
    inp_size = prep["inp_size"]

    B = state.shape[0]
    assert state.shape == (B, inp_size)

    TB = _choose_batch_tile(B)
    Bp = _round_up(B, 8)                 # sublane-aligned logical batch
    x = state
    if Bp != B:                          # at most 7 extra rows; common case: no-op
        x = jnp.pad(x, ((0, Bp - B), (0, 0)))
    num_tiles = pl.cdiv(Bp, TB)
    grid = (num_tiles,)

    kernel = functools.partial(
        _actor_kernel, prep["action_amp"], prep["position_amp"],
        prep["bound_lo"], prep["ln_eps"], actions)

    out_w = _OUT_W
    resident_bytes = (prep["w1t"].nbytes + prep["w2t"].nbytes +
                      prep["lnp"].nbytes + prep["b2r"].nbytes)
    tile_bytes = TB * inp_size * x.dtype.itemsize + TB * out_w * 4
    # resident params (double-buffered by the runtime) + pipelined tiles +
    # in-flight f32 intermediates + slack.
    vmem_limit = int(2 * resident_bytes + 4 * tile_bytes +
                     6 * TB * hidden * 4 + (4 << 20))
    vmem_limit = min(max(vmem_limit, 8 << 20), 32 << 20)

    b_work = num_tiles * TB
    cost = pl.CostEstimate(
        flops=2 * b_work * (inp_size * hidden + hidden * out_w),
        transcendentals=b_work * (hidden + out_w),
        bytes_accessed=int(b_work * inp_size * x.dtype.itemsize +
                           resident_bytes + b_work * out_w * 4),
    )

    out = pl.pallas_call(
        kernel,
        out_shape=jax.ShapeDtypeStruct((Bp, out_w), jnp.float32),
        grid=grid,
        in_specs=[
            pl.BlockSpec((TB, inp_size), lambda i: (i, 0)),      # state tile
            pl.BlockSpec((inp_size, hidden), lambda i: (0, 0)),  # w1t (resident)
            pl.BlockSpec((3, hidden), lambda i: (0, 0)),         # b1/gamma/beta
            pl.BlockSpec((hidden, out_w), lambda i: (0, 0)),     # w2t (resident)
            pl.BlockSpec((1, out_w), lambda i: (0, 0)),          # b2  (resident)
        ],
        out_specs=pl.BlockSpec((TB, out_w), lambda i: (i, 0)),
        compiler_params=pltpu.CompilerParams(
            dimension_semantics=("parallel",),
            vmem_limit_bytes=vmem_limit),
        cost_estimate=cost,
    )(x, prep["w1t"], prep["lnp"], prep["w2t"], prep["b2r"])

    act = out[:B, :actions]
    pos = out[:B, actions:2 * actions]
    # torch returns .squeeze() on both outputs
    return jnp.squeeze(act), jnp.squeeze(pos)


def init_actor_params(key, inp_size, actions, hidden=128):
    """Deterministic parameter init matching the torch module's shapes."""
    k1, k2, k3 = jax.random.split(key, 3)
    # w1 ~ Exponential(lambd=1)  (shape (hidden, inp_size))
    w1 = jax.random.exponential(k1, (hidden, inp_size), dtype=jnp.float32)
    b1 = jnp.zeros((hidden,), jnp.float32)
    # LayerNorm default init
    ln_g = jnp.ones((hidden,), jnp.float32)
    ln_b = jnp.zeros((hidden,), jnp.float32)
    # nn.Linear(hidden, 2*actions) default: U(-1/sqrt(hidden), 1/sqrt(hidden))
    bound = 1.0 / jnp.sqrt(hidden)
    w2 = jax.random.uniform(k2, (2 * actions, hidden), jnp.float32,
                            -bound, bound)
    b2 = jax.random.uniform(k3, (2 * actions,), jnp.float32, -bound, bound)
    return dict(w1=w1, b1=b1, ln_g=ln_g, ln_b=ln_b, w2=w2, b2=b2)


def _reference(state, params, *, actions, bounds, action_amp=1.0, eps=1e-5):
    """Pure-JAX reference for correctness checking."""
    h = state @ params["w1"].T + params["b1"]
    mu = h.mean(-1, keepdims=True)
    var = ((h - mu) ** 2).mean(-1, keepdims=True)
    h = (h - mu) / jnp.sqrt(var + eps) * params["ln_g"] + params["ln_b"]
    h = jax.nn.sigmoid(h)
    y = h @ params["w2"].T + params["b2"]
    a = jnp.tanh(y[:, :actions]) * action_amp
    p = jax.nn.sigmoid(y[:, actions:]) * (bounds[1] - bounds[0]) + bounds[0]
    return jnp.squeeze(a), jnp.squeeze(p)


if __name__ == "__main__":
    key = jax.random.PRNGKey(0)
    kp, kx, kx2 = jax.random.split(key, 3)

    B, inp_size, hidden, actions = 2, 16, 128, 4
    bounds = (-1.0, 1.0)
    action_amp = 1.0

    params = init_actor_params(kp, inp_size, actions, hidden=hidden)
    state = jax.random.normal(kx, (B, inp_size), dtype=jnp.float32)

    # --- f32 matmul path (tight tolerance) -----------------------------------
    prep_f32 = prepare_actor_params(params, actions=actions, bounds=bounds,
                                    action_amp=action_amp)
    act, pos = actor_forward(state, prep_f32)
    jax.block_until_ready((act, pos))

    ref_act, ref_pos = _reference(state, params, actions=actions,
                                  bounds=bounds, action_amp=action_amp)
    assert jnp.allclose(act, ref_act, atol=1e-5, rtol=1e-5)
    assert jnp.allclose(pos, ref_pos, atol=1e-5, rtol=1e-5)

    # --- bf16 matmul operands (f32 accumulation), looser tolerance -----------
    prep_bf16 = prepare_actor_params(params, actions=actions, bounds=bounds,
                                     action_amp=action_amp,
                                     matmul_dtype=jnp.bfloat16)
    act16, pos16 = actor_forward(state, prep_bf16)
    jax.block_until_ready((act16, pos16))
    assert jnp.allclose(act16, ref_act, atol=5e-2, rtol=5e-2)
    assert jnp.allclose(pos16, ref_pos, atol=5e-2, rtol=5e-2)

    # --- larger batch exercises the 2-tile grid / ragged-block path ----------
    B2 = 300
    state2 = jax.random.normal(kx2, (B2, inp_size), dtype=jnp.float32)
    act2, pos2 = actor_forward(state2, prep_f32)
    jax.block_until_ready((act2, pos2))
    ref_act2, ref_pos2 = _reference(state2, params, actions=actions,
                                    bounds=bounds, action_amp=action_amp)
    assert jnp.allclose(act2, ref_act2, atol=1e-4, rtol=1e-4)
    assert jnp.allclose(pos2, ref_pos2, atol=1e-4, rtol=1e-4)

    print("KERNEL_OK")
</pallas_src>

<mosaic_0001>
module attributes {stable_mosaic.version = 11 : i64} {
  func.func @_actor_kernel(%arg0: i32, %arg1: memref<8x16xf32, #tpu.memory_space<vmem>>, %arg2: memref<16x128xf32, #tpu.memory_space<vmem>>, %arg3: memref<3x128xf32, #tpu.memory_space<vmem>>, %arg4: memref<128x128xf32, #tpu.memory_space<vmem>>, %arg5: memref<1x128xf32, #tpu.memory_space<vmem>>, %arg6: memref<8x128xf32, #tpu.memory_space<vmem>>) attributes {dimension_semantics = [#tpu.dimension_semantics<parallel>], iteration_bounds = array<i64: 1>, scalar_prefetch = 0 : i64, scratch_operands = 0 : i64, tpu.core_type = #tpu.core_type<tc>, window_params = [{transform_indices = @transform_0, window_bounds = array<i64: 8, 16>}, {pipeline_mode = #tpu.pipeline_mode<synchronous>, transform_indices = @transform_1, window_bounds = array<i64: 16, 128>}, {pipeline_mode = #tpu.pipeline_mode<synchronous>, transform_indices = @transform_2, window_bounds = array<i64: 3, 128>}, {pipeline_mode = #tpu.pipeline_mode<synchronous>, transform_indices = @transform_3, window_bounds = array<i64: 128, 128>}, {pipeline_mode = #tpu.pipeline_mode<synchronous>, transform_indices = @transform_4, window_bounds = array<i64: 1, 128>}, {transform_indices = @transform_5, window_bounds = array<i64: 8, 128>}]} {
    %c0 = arith.constant 0 : index
    %c0_0 = arith.constant 0 : index
    %0 = vector.load %arg1[%c0, %c0_0] : memref<8x16xf32, #tpu.memory_space<vmem>>, vector<8x16xf32>
    %c0_1 = arith.constant 0 : index
    %c0_2 = arith.constant 0 : index
    %1 = vector.load %arg2[%c0_1, %c0_2] : memref<16x128xf32, #tpu.memory_space<vmem>>, vector<16x128xf32>
    %cst = arith.constant dense<0.000000e+00> : vector<8x128xf32>
    %2 = tpu.matmul %0, %1, %cst {dimension_numbers = #tpu.dot_dimension_numbers<[1], [0], [0], [1], [0, 0, 1, 1], [], []>} : vector<8x16xf32>, vector<16x128xf32>, vector<8x128xf32> -> vector<8x128xf32>
    %c0_3 = arith.constant 0 : index
    %c0_4 = arith.constant 0 : index
    %3 = vector.load %arg3[%c0_3, %c0_4] : memref<3x128xf32, #tpu.memory_space<vmem>>, vector<3x128xf32>
    %4 = vector.extract_strided_slice %3 {offsets = [0, 0], sizes = [1, 128], strides = [1, 1]} : vector<3x128xf32> to vector<1x128xf32>
    %5 = vector.broadcast %4 : vector<1x128xf32> to vector<8x128xf32>
    %6 = arith.addf %2, %5 : vector<8x128xf32>
    %cst_5 = arith.constant dense<0.000000e+00> : vector<8xf32>
    %7 = vector.multi_reduction <add>, %6, %cst_5 [1] : vector<8x128xf32> to vector<8xf32>
    %8 = vector.shape_cast %7 : vector<8xf32> to vector<8x1xf32>
    %cst_6 = arith.constant 1.280000e+02 : f32
    %9 = vector.broadcast %cst_6 : f32 to vector<8x1xf32>
    %10 = arith.divf %8, %9 : vector<8x1xf32>
    %11 = vector.broadcast %10 : vector<8x1xf32> to vector<8x128xf32>
    %12 = arith.subf %6, %11 : vector<8x128xf32>
    %13 = arith.mulf %12, %12 : vector<8x128xf32>
    %cst_7 = arith.constant dense<0.000000e+00> : vector<8xf32>
    %14 = vector.multi_reduction <add>, %13, %cst_7 [1] : vector<8x128xf32> to vector<8xf32>
    %15 = vector.shape_cast %14 : vector<8xf32> to vector<8x1xf32>
    %cst_8 = arith.constant 1.280000e+02 : f32
    %16 = vector.broadcast %cst_8 : f32 to vector<8x1xf32>
    %17 = arith.divf %15, %16 : vector<8x1xf32>
    %cst_9 = arith.constant 9.99999974E-6 : f32
    %18 = vector.broadcast %cst_9 : f32 to vector<8x1xf32>
    %19 = arith.addf %17, %18 : vector<8x1xf32>
    %20 = math.rsqrt %19 : vector<8x1xf32>
    %21 = vector.broadcast %20 : vector<8x1xf32> to vector<8x128xf32>
    %22 = arith.mulf %12, %21 : vector<8x128xf32>
    %23 = vector.extract_strided_slice %3 {offsets = [1, 0], sizes = [1, 128], strides = [1, 1]} : vector<3x128xf32> to vector<1x128xf32>
    %24 = vector.broadcast %23 : vector<1x128xf32> to vector<8x128xf32>
    %25 = arith.mulf %22, %24 : vector<8x128xf32>
    %26 = vector.extract_strided_slice %3 {offsets = [2, 0], sizes = [1, 128], strides = [1, 1]} : vector<3x128xf32> to vector<1x128xf32>
    %27 = vector.broadcast %26 : vector<1x128xf32> to vector<8x128xf32>
    %28 = arith.addf %25, %27 : vector<8x128xf32>
    %29 = arith.negf %28 : vector<8x128xf32>
    %30 = math.exp %29 : vector<8x128xf32>
    %cst_10 = arith.constant 1.000000e+00 : f32
    %31 = vector.broadcast %cst_10 : f32 to vector<8x128xf32>
    %32 = arith.addf %31, %30 : vector<8x128xf32>
    %33 = arith.divf %31, %32 : vector<8x128xf32>
    %c0_11 = arith.constant 0 : index
    %c0_12 = arith.constant 0 : index
    %34 = vector.load %arg4[%c0_11, %c0_12] : memref<128x128xf32, #tpu.memory_space<vmem>>, vector<128x128xf32>
    %cst_13 = arith.constant dense<0.000000e+00> : vector<8x128xf32>
    %35 = tpu.matmul %33, %34, %cst_13 {dimension_numbers = #tpu.dot_dimension_numbers<[1], [0], [0], [1], [0, 0, 1, 1], [], []>} : vector<8x128xf32>, vector<128x128xf32>, vector<8x128xf32> -> vector<8x128xf32>
    %c0_14 = arith.constant 0 : index
    %c0_15 = arith.constant 0 : index
    %36 = vector.load %arg5[%c0_14, %c0_15] : memref<1x128xf32, #tpu.memory_space<vmem>>, vector<1x128xf32>
    %37 = vector.broadcast %36 : vector<1x128xf32> to vector<8x128xf32>
    %38 = arith.addf %35, %37 : vector<8x128xf32>
    %39 = tpu.iota {dimensions = array<i32: 1>} : vector<8x128xi32>
    %c4_i32 = arith.constant 4 : i32
    %40 = vector.broadcast %c4_i32 : i32 to vector<8x128xi32>
    %41 = arith.cmpi slt, %39, %40 : vector<8x128xi32>
    %cst_16 = arith.constant 5.000000e-01 : f32
    %42 = vector.broadcast %cst_16 : f32 to vector<8x128xf32>
    %43 = arith.mulf %42, %38 : vector<8x128xf32>
    %44 = arith.select %41, %38, %43 : vector<8x128xi1>, vector<8x128xf32>
    %45 = math.tanh %44 : vector<8x128xf32>
    %cst_17 = arith.constant 1.000000e+00 : f32
    %46 = vector.broadcast %cst_17 : f32 to vector<8x128xf32>
    %47 = arith.mulf %45, %46 : vector<8x128xf32>
    %cst_18 = arith.constant 5.000000e-01 : f32
    %48 = vector.broadcast %cst_18 : f32 to vector<8x128xf32>
    %49 = arith.mulf %48, %45 : vector<8x128xf32>
    %cst_19 = arith.constant 5.000000e-01 : f32
    %50 = vector.broadcast %cst_19 : f32 to vector<8x128xf32>
    %51 = arith.addf %49, %50 : vector<8x128xf32>
    %cst_20 = arith.constant 2.000000e+00 : f32
    %52 = vector.broadcast %cst_20 : f32 to vector<8x128xf32>
    %53 = arith.mulf %51, %52 : vector<8x128xf32>
    %cst_21 = arith.constant -1.000000e+00 : f32
    %54 = vector.broadcast %cst_21 : f32 to vector<8x128xf32>
    %55 = arith.addf %53, %54 : vector<8x128xf32>
    %56 = arith.select %41, %47, %55 : vector<8x128xi1>, vector<8x128xf32>
    %c0_22 = arith.constant 0 : index
    %c0_23 = arith.constant 0 : index
    %57 = vector.load %arg6[%c0_22, %c0_23] : memref<8x128xf32, #tpu.memory_space<vmem>>, vector<8x128xf32>
    tpu.vector_store %arg6[%c0_22, %c0_23], %56 {strides = array<i32>} : memref<8x128xf32, #tpu.memory_space<vmem>>, vector<8x128xf32>,
    return
  }
  func.func @transform_0(%arg0: i32) -> (i32, i32) {
    %c0_i32 = arith.constant 0 : i32
    %c0_i32_0 = arith.constant 0 : i32
    return %arg0, %c0_i32 : i32, i32
  }
  func.func @transform_1(%arg0: i32) -> (i32, i32) {
    %c0_i32 = arith.constant 0 : i32
    %c0_i32_0 = arith.constant 0 : i32
    %c0_i32_1 = arith.constant 0 : i32
    return %c0_i32, %c0_i32_0 : i32, i32
  }
  func.func @transform_2(%arg0: i32) -> (i32, i32) {
    %c0_i32 = arith.constant 0 : i32
    %c0_i32_0 = arith.constant 0 : i32
    %c0_i32_1 = arith.constant 0 : i32
    return %c0_i32, %c0_i32_0 : i32, i32
  }
  func.func @transform_3(%arg0: i32) -> (i32, i32) {
    %c0_i32 = arith.constant 0 : i32
    %c0_i32_0 = arith.constant 0 : i32
    %c0_i32_1 = arith.constant 0 : i32
    return %c0_i32, %c0_i32_0 : i32, i32
  }
  func.func @transform_4(%arg0: i32) -> (i32, i32) {
    %c0_i32 = arith.constant 0 : i32
    %c0_i32_0 = arith.constant 0 : i32
    %c0_i32_1 = arith.constant 0 : i32
    return %c0_i32, %c0_i32_0 : i32, i32
  }
  func.func @transform_5(%arg0: i32) -> (i32, i32) {
    %c0_i32 = arith.constant 0 : i32
    %c0_i32_0 = arith.constant 0 : i32
    return %arg0, %c0_i32 : i32, i32
  }
}

</mosaic_0001>

<llo_original>
// kernel: tpu_custom_call.1
$region0: #{tpu_custom_call.1}
  #allocation0 [shape = 'u32[]', space=smem, size = 0x4, offset = 0x4, fixed_abs, tag = 'smem constant byte address 0x4 - core index']
  #allocation1 [shape = 'u32[72,128]{1,0:T(1,128)}', space=vmem, size = 0x9000, scoped, tag = 'internal scratch']
  %s0 = inlined_call_operand.hbm [shape: f32[8,16], index: 0, kind: input, shape index: {}]
  %s1 = inlined_call_operand.hbm [shape: f32[16,128], index: 1, kind: input, shape index: {}]
  %s2 = inlined_call_operand.hbm [shape: f32[3,128], index: 2, kind: input, shape index: {}]
  %s3 = inlined_call_operand.hbm [shape: f32[128,128], index: 3, kind: input, shape index: {}]
  %s4 = inlined_call_operand.vmem [shape: f32[1,128], index: 4, kind: input, shape index: {}]
  %s5 = inlined_call_operand.hbm [shape: f32[8,128], index: 5, kind: output, shape index: {}]
  %s6 = sld [smem:[#allocation0]]
  $region46: #{tpu_custom_call.1} parent=0
    _
  %s8 = ssub.s32 1, %s6
  %s9 = scalar_select 0, %s8, %s6
  $region1: #{tpu_custom_call.1} parent=0
    #allocation2 [shape = 'u8[4096]{0}', space=vmem, size = 0x1000, scoped, tag = 'input window, operand 0, single buffered']
    #allocation3 [shape = 's32[1]{0}', space=sflag, size = 0x4, scoped, tag = 'scoped memory for tpu_custom_call.1']
    #allocation4 [shape = 's32[1]{0}', space=sflag, size = 0x4, scoped, tag = 'scoped memory for tpu_custom_call.1']
    #allocation5 [shape = 'u8[8192]{0}', space=vmem, size = 0x2000, scoped, tag = 'input window, operand 1, single buffered']
    #allocation6 [shape = 's32[1]{0}', space=sflag, size = 0x4, scoped, tag = 'scoped memory for tpu_custom_call.1']
    #allocation7 [shape = 'u8[2048]{0}', space=vmem, size = 0x800, scoped, tag = 'input window, operand 2, single buffered']
    #allocation8 [shape = 'u8[65536]{0}', space=vmem, size = 0x10000, scoped, tag = 'input window, operand 3, single buffered']
    #allocation9 [shape = 's32[1]{0}', space=sflag, size = 0x4, scoped, tag = 'scoped memory for tpu_custom_call.1']
    #allocation10 [shape = 'u8[4096]{0}', space=vmem, size = 0x1000, scoped, tag = 'output window, operand 0, single buffered']
    %10 = vsyncpa [#allocation3], 0
    %11 = vsyncpa [#allocation6], 0
    %12 = vsyncpa [#allocation9], 0
    %13 = vsyncpa [#allocation4], 0
    // Predicated region
    $region2: #{tpu_custom_call.1} parent=1 // pred_check
      _
    $region3: #{tpu_custom_call.1} parent=1 // pred_check_branch
      %15 = sbr.rel (0) target = $region5
    $region4: #{tpu_custom_call.1} parent=1 // pred_region
      %17 = vsyncadd [#allocation3], 0
      %s19 = sshll.u32 %s0, 4
      %s20 = int_to_ptr.hbm [resolvable:$true] %s19
      %s21 = sshll.u32 [#allocation2], 4
      %s22 = int_to_ptr.vmem [resolvable:$true] %s21
      %24 = dma.hbm_to_vmem [thread:$0]  %s20, 128, %s22, [#allocation3]
    $region5: #{tpu_custom_call.1} parent=1 // pred_fallthru
      _
    // Predicated region
    $region6: #{tpu_custom_call.1} parent=1 // pred_check
      _
    $region7: #{tpu_custom_call.1} parent=1 // pred_check_branch
      %26 = sbr.rel (0) target = $region9
    $region8: #{tpu_custom_call.1} parent=1 // pred_region
      %28 = vsyncadd [#allocation6], 0
      %s29 = sshll.u32 %s1, 4
      %s30 = int_to_ptr.hbm [resolvable:$true] %s29
      %s31 = sshll.u32 [#allocation5], 4
      %s32 = int_to_ptr.vmem [resolvable:$true] %s31
      %37 = dma.hbm_to_vmem [thread:$0]  %s30, 256, %s32, [#allocation6], 128, 128, 8
    $region9: #{tpu_custom_call.1} parent=1 // pred_fallthru
      _
    // Predicated region
    $region10: #{tpu_custom_call.1} parent=1 // pred_check
      _
    $region11: #{tpu_custom_call.1} parent=1 // pred_check_branch
      %39 = sbr.rel (0) target = $region13
    $region12: #{tpu_custom_call.1} parent=1 // pred_region
      %41 = vsyncadd [#allocation6], 0
      %s43 = sshll.u32 %s2, 4
      %s44 = int_to_ptr.hbm [resolvable:$true] %s43
      %s45 = sshll.u32 [#allocation7], 4
      %s46 = int_to_ptr.vmem [resolvable:$true] %s45
      %48 = dma.hbm_to_vmem [thread:$0]  %s44, 64, %s46, [#allocation6]
    $region13: #{tpu_custom_call.1} parent=1 // pred_fallthru
      _
    // Predicated region
    $region14: #{tpu_custom_call.1} parent=1 // pred_check
      _
    $region15: #{tpu_custom_call.1} parent=1 // pred_check_branch
      %50 = sbr.rel (0) target = $region17
    $region16: #{tpu_custom_call.1} parent=1 // pred_region
      %52 = vsyncadd [#allocation9], 0
      %s53 = sshll.u32 %s3, 4
      %s54 = int_to_ptr.hbm [resolvable:$true] %s53
      %s55 = sshll.u32 [#allocation8], 4
      %s56 = int_to_ptr.vmem [resolvable:$true] %s55
      %61 = dma.hbm_to_vmem [thread:$0]  %s54, 2048, %s56, [#allocation9], 128, 128, 8
    $region17: #{tpu_custom_call.1} parent=1 // pred_fallthru
      _
    // Predicated region
    $region18: #{tpu_custom_call.1} parent=1 // pred_check
      _
    $region19: #{tpu_custom_call.1} parent=1 // pred_check_branch
      %63 = sbr.rel (0) target = $region21
    $region20: #{tpu_custom_call.1} parent=1 // pred_region
      _
    $region21: #{tpu_custom_call.1} parent=1 // pred_fallthru
      _
    // Predicated region
    $region22: #{tpu_custom_call.1} parent=1 // pred_check
      _
    $region23: #{tpu_custom_call.1} parent=1 // pred_check_branch
      %65 = sbr.rel (0) target = $region25
    $region24: #{tpu_custom_call.1} parent=1 // pred_region
      %67 = dma.done [#allocation3], 128
    $region25: #{tpu_custom_call.1} parent=1 // pred_fallthru
      _
    // Predicated region
    $region26: #{tpu_custom_call.1} parent=1 // pred_check
      _
    $region27: #{tpu_custom_call.1} parent=1 // pred_check_branch
      %69 = sbr.rel (0) target = $region29
    $region28: #{tpu_custom_call.1} parent=1 // pred_region
      %71 = dma.done [#allocation6], 256
    $region29: #{tpu_custom_call.1} parent=1 // pred_fallthru
      _
    // Predicated region
    $region30: #{tpu_custom_call.1} parent=1 // pred_check
      _
    $region31: #{tpu_custom_call.1} parent=1 // pred_check_branch
      %73 = sbr.rel (0) target = $region33
    $region32: #{tpu_custom_call.1} parent=1 // pred_region
      %75 = dma.done [#allocation6], 64
    $region33: #{tpu_custom_call.1} parent=1 // pred_fallthru
      _
    // Predicated region
    $region34: #{tpu_custom_call.1} parent=1 // pred_check
      _
    $region35: #{tpu_custom_call.1} parent=1 // pred_check_branch
      %77 = sbr.rel (0) target = $region37
    $region36: #{tpu_custom_call.1} parent=1 // pred_region
      %79 = dma.done [#allocation9], 2048
    $region37: #{tpu_custom_call.1} parent=1 // pred_fallthru
      _
    %v80 = vld [vmem:[#allocation2] sm:$0xff]
    %v81 = vld [vmem:[#allocation5] sm:$0xff]
    %v82 = vld [vmem:[#allocation5 + $0x8] sm:$0xff]
    %v83 = vld [vmem:[#allocation7] sm:$0x7]
    %v84 = vperm.slane %v83, 0
    %vm85 = vcmask 130048
    %v87 = vsel %vm85, %v80, 0
    %89 = vmatpush.msra.mxu0 0.0
    %90 = vmatpush.msra.mxu0 0.0
    %91 = vmatpush.msra.mxu0 0.0
    %92 = vmatpush.msra.mxu0 0.0
    %93 = vmatpush.msra.mxu0 0.0
    %94 = vmatpush.msra.mxu0 0.0
    %95 = vmatpush.msra.mxu0 0.0
    %96 = vmatpush.msra.mxu0 0.0
    %97 = vmatpush.msra.mxu0 0.0
    %98 = vmatpush.msra.mxu0 0.0
    %99 = vmatpush.msra.mxu0 0.0
    %100 = vmatpush.msra.mxu0 0.0
    %101 = vmatpush.msra.mxu0 0.0
    %102 = vmatpush.msra.mxu0 0.0
    %103 = vmatpush.msra.mxu0 %v82
    %104 = vmatpush.msra.mxu0 %v81
    %105 = vmatmul.f32.gmra.mxu0 %v87
    %v106 = vpop.f32.mrf.mxu0
    %v107 = vadd.f32 %v84, %v106
    %108 = vdwg.mxu0
    %109 = vadd.xlane.f32.xlu0 %v107
    %v110 = vpop.xlane.xlu0 %109
    %v111 = vrcp.pop 128.0
    %v112 = vmul.f32 128.0, %v111
    %v113 = vsub.f32 1.0, %v112
    %v114 = vmul.f32 %v111, %v113
    %v115 = vadd.f32 %v111, %v114
    %vm116 = vweird.f32 %v111
    %v117 = vsel %vm116, %v111, %v115
    %v118 = vmul.f32 %v110, %v117
    %v119 = vsub.f32 %v107, %v118
    %v120 = vmul.f32 %v119, %v119
    %121 = vadd.xlane.f32.xlu0 %v120
    %v122 = vpop.xlane.xlu0 %121
    %v123 = vmul.f32 %v122, %v117
    %v124 = vadd.f32 %v123, 1e-05
    %v125 = vrsqrt.pop %v124
    %v126 = vmul.f32 %v125, %v124
    %v127 = vmul.f32 %v126, %v125
    %v128 = vmul.f32 0.5, %v127
    %v129 = vsub.f32 1.5, %v128
    %v130 = vmul.f32 %v125, %v129
    %vm131 = vweird.f32 %v124
    %vm132 = vweird.f32 %v125
    %vm133 = vmor %vm131, %vm132
    %v134 = vsel %vm133, %v125, %v130
    %v135 = vmul.f32 %v119, %v134
    %v136 = vperm.slane %v83, 1
    %v137 = vmul.f32 %v135, %v136
    %v138 = vperm.slane %v83, 2
    %v139 = vadd.f32 %v137, %v138
    %v140 = vxor.u32 %v139, 2147483648
    %v141 = vmul.f32 %v140, 1.442695
    %v142 = vpow.pop %v141
    %v143 = vadd.f32 %v142, 1.0
    %v144 = vrcp.pop %v143
    %v145 = vmul.f32 %v143, %v144
    %v146 = vsub.f32 1.0, %v145
    %v147 = vmul.f32 %v144, %v146
    %v148 = vadd.f32 %v144, %v147
    %vm149 = vweird.f32 %v143
    %vm150 = vweird.f32 %v144
    %vm151 = vmor %vm149, %vm150
    %v152 = vsel %vm151, %v144, %v148
    %v153 = vand.u32 2147483647, %v143
    %vm154 = vcmp.eq.f32.partialorder %v153, 8.507059e+37
    %v155 = vand.u32 %v143, 2147483648
    %v156 = vor.u32 1.1754944e-38, %v155
    %v157 = vsel %vm154, %v156, %v152
    %v158 = vmul.f32 1.0, %v157
    %v159 = vld [vmem:[#allocation8] sm:$0xff]
    %v160 = vld [vmem:[#allocation8 + $0x8] sm:$0xff]
    %v161 = vld [vmem:[#allocation8 + $0x10] sm:$0xff]
    %v162 = vld [vmem:[#allocation8 + $0x18] sm:$0xff]
    %v163 = vld [vmem:[#allocation8 + $0x20] sm:$0xff]
    %v164 = vld [vmem:[#allocation8 + $0x28] sm:$0xff]
    %v165 = vld [vmem:[#allocation8 + $0x30] sm:$0xff]
    %v166 = vld [vmem:[#allocation8 + $0x38] sm:$0xff]
    %v167 = vld [vmem:[#allocation8 + $0x40] sm:$0xff]
    %v168 = vld [vmem:[#allocation8 + $0x48] sm:$0xff]
    %v169 = vld [vmem:[#allocation8 + $0x50] sm:$0xff]
    %v170 = vld [vmem:[#allocation8 + $0x58] sm:$0xff]
    %v171 = vld [vmem:[#allocation8 + $0x60] sm:$0xff]
    %v172 = vld [vmem:[#allocation8 + $0x68] sm:$0xff]
    %v173 = vld [vmem:[#allocation8 + $0x70] sm:$0xff]
    %v174 = vld [vmem:[#allocation8 + $0x78] sm:$0xff]
    %v175 = vld [vmem:[%s4] sm:$0x1]
    %v177 = vperm.slane %v175, 0
    %179 = vmatpush.msra.mxu0 %v174
    %180 = vmatpush.msra.mxu0 %v173
    %181 = vmatpush.msra.mxu0 %v172
    %182 = vmatpush.msra.mxu0 %v171
    %183 = vmatpush.msra.mxu0 %v170
    %184 = vmatpush.msra.mxu0 %v169
    %185 = vmatpush.msra.mxu0 %v168
    %186 = vmatpush.msra.mxu0 %v167
    %187 = vmatpush.msra.mxu0 %v166
    %188 = vmatpush.msra.mxu0 %v165
    %189 = vmatpush.msra.mxu0 %v164
    %190 = vmatpush.msra.mxu0 %v163
    %191 = vmatpush.msra.mxu0 %v162
    %192 = vmatpush.msra.mxu0 %v161
    %193 = vmatpush.msra.mxu0 %v160
    %194 = vmatpush.msra.mxu0 %v159
    %195 = vmatmul.f32.gmra.mxu0 %v158
    %v196 = vpop.f32.mrf.mxu0
    %v197 = vadd.f32 %v177, %v196
    %198 = vdwg.mxu0
    %v199 = vlaneseq
    %v200 = vand.u32 %v199, 127
    %vm201 = vcmp.lt.s32.totalorder %v200, 4
    %v202 = vmul.f32 %v197, 0.5
    %v203 = vsel %vm201, %v197, %v202
    %v204 = vtanh.pop %v203
    %v205 = vmul.f32 %v204, 0.5
    %v206 = vadd.f32 %v205, 0.5
    %v207 = vmul.f32 %v206, 2.0
    %v208 = vadd.f32 %v207, -1.0
    %v209 = vsel %vm201, %v204, %v208
    %210 = vst [vmem:[#allocation10] sm:$0xff] %v209
    // Predicated region
    $region38: #{tpu_custom_call.1} parent=1 // pred_check
      _
    $region39: #{tpu_custom_call.1} parent=1 // pred_check_branch
      %212 = sbr.rel (0) target = $region41
    $region40: #{tpu_custom_call.1} parent=1 // pred_region
      %214 = vsyncadd [#allocation4], 0
      %s216 = sshll.u32 [#allocation10], 4
      %s217 = int_to_ptr.vmem [resolvable:$true] %s216
      %s218 = sshll.u32 %s5, 4
      %s219 = int_to_ptr.hbm [resolvable:$true] %s218
      %221 = dma.vmem_to_hbm [thread:$0]  %s217, 128, %s219, [#allocation4]
    $region41: #{tpu_custom_call.1} parent=1 // pred_fallthru
      _
    // Predicated region
    $region42: #{tpu_custom_call.1} parent=1 // pred_check
      _
    $region43: #{tpu_custom_call.1} parent=1 // pred_check_branch
      %223 = sbr.rel (0) target = $region45
    $region44: #{tpu_custom_call.1} parent=1 // pred_region
      %225 = dma.done [#allocation4], 128
    $region45: #{tpu_custom_call.1} parent=1 // pred_fallthru
      _
    %226 = vsyncpa [#allocation3], 1
    %227 = vsyncpa [#allocation6], 1
    %228 = vsyncpa [#allocation9], 1
    %229 = vsyncpa [#allocation4], 1

</llo_original>
